<compile_context>
chip_gen: v7x
topology: tpu7x:2x2x1
jax: 0.10.0
libtpu: 0.0.40
codegen_flags: <defaults>
</compile_context>

<pallas_src>
import jax
import jax.numpy as jnp
from jax import lax
from jax.experimental import pallas as pl
from jax.experimental.pallas import tpu as pltpu


# A (m, k) x B (n, k) -> (m, n), i.e. A @ B.T without materializing a transpose.
_CONTRACT_DIM1 = (((1,), (1,)), ((), ()))


def _concat_fusion_kernel(x_ref, y_ref, wx_ref, wy_ref, b_ref, out_ref):
    # x_ref : (tm, Dx)  f32      y_ref : (tm, Dy)  f32
    # wx_ref: (tn, Dx)  bf16     wy_ref: (tn, Dy)  bf16   (torch layout: out x in)
    # b_ref : (1, tn)   f32
    # out_ref: (tm, tn)
    xb = x_ref[...].astype(wx_ref.dtype)   # in-kernel bf16 cast (VPU, hidden)
    yb = y_ref[...].astype(wy_ref.dtype)
    acc = lax.dot_general(xb, wx_ref[...], _CONTRACT_DIM1,
                          preferred_element_type=jnp.float32)
    acc = acc + lax.dot_general(yb, wy_ref[...], _CONTRACT_DIM1,
                                preferred_element_type=jnp.float32)
    out_ref[...] = (acc + b_ref[...]).astype(out_ref.dtype)


def prepare_concat_fusion_params(weight, bias, dx, compute_dtype=jnp.bfloat16):
    """One-time parameter prep (outside the hot path).

    weight: torch-layout (Dout, Din); bias: (Dout,).  Splits the weight at the
    concat boundary and casts it to the MXU compute dtype.  No transpose is
    materialized -- the kernel contracts on the 'in' dim of the torch layout.
    """
    w_x = weight[:, :dx].astype(compute_dtype)
    w_y = weight[:, dx:].astype(compute_dtype)
    b2 = bias.reshape(1, -1).astype(jnp.float32)
    return w_x, w_y, b2


def _pick_tile(dim, candidates):
    for c in candidates:
        if c <= dim and dim % c == 0:
            return c
    return dim  # small / unaligned dim: use full extent as a single block


def concat_fusion(x, y, w_x, w_y, b2):
    """x: (B, Dx), y: (B, Dy), w_x: (Dout, Dx), w_y: (Dout, Dy), b2: (1, Dout)."""
    B, Dx = x.shape
    By, Dy = y.shape
    Dout = w_x.shape[0]
    assert By == B and w_y.shape == (Dout, Dy) and b2.shape == (1, Dout)

    # Batch (sublane) tile and a lane-dense (multiple-of-128) output tile.
    tm = _pick_tile(B, (256, 128, 64, 32, 16, 8))
    tn = _pick_tile(Dout, (512, 256, 128))
    gm = B // tm
    gn = Dout // tn

    out = pl.pallas_call(
        _concat_fusion_kernel,
        out_shape=jax.ShapeDtypeStruct((B, Dout), x.dtype),
        grid=(gm, gn),
        in_specs=[
            pl.BlockSpec((tm, Dx), lambda i, j: (i, 0)),   # x  (f32, cast in-kernel)
            pl.BlockSpec((tm, Dy), lambda i, j: (i, 0)),   # y  (f32, cast in-kernel)
            pl.BlockSpec((tn, Dx), lambda i, j: (j, 0)),   # W[:, :Dx]  bf16
            pl.BlockSpec((tn, Dy), lambda i, j: (j, 0)),   # W[:, Dx:]  bf16
            pl.BlockSpec((1, tn), lambda i, j: (0, j)),    # bias       f32
        ],
        out_specs=pl.BlockSpec((tm, tn), lambda i, j: (i, j)),
        compiler_params=pltpu.CompilerParams(
            dimension_semantics=("parallel", "parallel"),
        ),
    )(x, y, w_x, w_y, b2)

    # Forward returns (x, y, output), exactly like the torch module.
    return x, y, out


if __name__ == "__main__":
    # fusion_input_dim = Dx + Dy = 256, fusion_output_dim = 512 (lane-dense output).
    B, Dx, Dy, Dout = 16, 128, 128, 512
    Din = Dx + Dy

    key = jax.random.PRNGKey(0)
    kx, ky, kw, kb = jax.random.split(key, 4)

    x = jax.random.normal(kx, (B, Dx), dtype=jnp.float32)
    y = jax.random.normal(ky, (B, Dy), dtype=jnp.float32)

    # torch nn.Linear default init: U(-1/sqrt(Din), 1/sqrt(Din))
    bound = 1.0 / (Din ** 0.5)
    weight = jax.random.uniform(kw, (Dout, Din), minval=-bound, maxval=bound,
                                dtype=jnp.float32)
    bias = jax.random.uniform(kb, (Dout,), minval=-bound, maxval=bound,
                              dtype=jnp.float32)

    # One-time param prep (outside the hot path): split torch-layout weight, bf16 cast.
    w_x, w_y, b2 = prepare_concat_fusion_params(weight, bias, Dx)

    x_out, y_out, out = concat_fusion(x, y, w_x, w_y, b2)
    jax.block_until_ready(out)

    # Tight check: identical bf16-in / f32-accumulate math in plain JAX.
    ref_bf16 = (lax.dot_general(x.astype(jnp.bfloat16), w_x, _CONTRACT_DIM1,
                                preferred_element_type=jnp.float32)
                + lax.dot_general(y.astype(jnp.bfloat16), w_y, _CONTRACT_DIM1,
                                  preferred_element_type=jnp.float32)
                + b2)
    # Loose check vs the torch module's full-f32 math (inputs were rounded to bf16).
    ref_f32 = jnp.concatenate([x, y], axis=1) @ weight.T + bias

    assert out.shape == (B, Dout)
    assert jnp.allclose(out, ref_bf16, atol=1e-3, rtol=1e-3)
    assert jnp.allclose(out, ref_f32, atol=1e-1, rtol=1e-1)
    assert (x_out is x) and (y_out is y)

    print("KERNEL_OK")
</pallas_src>

<mosaic_0001>
module attributes {stable_mosaic.version = 11 : i64} {
  func.func @_concat_fusion_kernel(%arg0: i32, %arg1: i32, %arg2: memref<16x128xf32, #tpu.memory_space<vmem>>, %arg3: memref<16x128xf32, #tpu.memory_space<vmem>>, %arg4: memref<512x128xbf16, #tpu.memory_space<vmem>>, %arg5: memref<512x128xbf16, #tpu.memory_space<vmem>>, %arg6: memref<1x512xf32, #tpu.memory_space<vmem>>, %arg7: memref<16x512xf32, #tpu.memory_space<vmem>>) attributes {dimension_semantics = [#tpu.dimension_semantics<parallel>, #tpu.dimension_semantics<parallel>], iteration_bounds = array<i64: 1, 1>, scalar_prefetch = 0 : i64, scratch_operands = 0 : i64, tpu.core_type = #tpu.core_type<tc>, window_params = [{transform_indices = @transform_0, window_bounds = array<i64: 16, 128>}, {transform_indices = @transform_1, window_bounds = array<i64: 16, 128>}, {transform_indices = @transform_2, window_bounds = array<i64: 512, 128>}, {transform_indices = @transform_3, window_bounds = array<i64: 512, 128>}, {transform_indices = @transform_4, window_bounds = array<i64: 1, 512>}, {transform_indices = @transform_5, window_bounds = array<i64: 16, 512>}]} {
    %c0 = arith.constant 0 : index
    %c0_0 = arith.constant 0 : index
    %0 = vector.load %arg2[%c0, %c0_0] : memref<16x128xf32, #tpu.memory_space<vmem>>, vector<16x128xf32>
    %1 = arith.truncf %0 : vector<16x128xf32> to vector<16x128xbf16>
    %c0_1 = arith.constant 0 : index
    %c0_2 = arith.constant 0 : index
    %2 = vector.load %arg3[%c0_1, %c0_2] : memref<16x128xf32, #tpu.memory_space<vmem>>, vector<16x128xf32>
    %3 = arith.truncf %2 : vector<16x128xf32> to vector<16x128xbf16>
    %c0_3 = arith.constant 0 : index
    %c0_4 = arith.constant 0 : index
    %4 = vector.load %arg4[%c0_3, %c0_4] : memref<512x128xbf16, #tpu.memory_space<vmem>>, vector<512x128xbf16>
    %cst = arith.constant dense<0.000000e+00> : vector<16x512xf32>
    %5 = tpu.matmul %1, %4, %cst {dimension_numbers = #tpu.dot_dimension_numbers<[1], [1], [0], [0], [0, 0, 1, 0], [], []>} : vector<16x128xbf16>, vector<512x128xbf16>, vector<16x512xf32> -> vector<16x512xf32>
    %c0_5 = arith.constant 0 : index
    %c0_6 = arith.constant 0 : index
    %6 = vector.load %arg5[%c0_5, %c0_6] : memref<512x128xbf16, #tpu.memory_space<vmem>>, vector<512x128xbf16>
    %cst_7 = arith.constant dense<0.000000e+00> : vector<16x512xf32>
    %7 = tpu.matmul %3, %6, %cst_7 {dimension_numbers = #tpu.dot_dimension_numbers<[1], [1], [0], [0], [0, 0, 1, 0], [], []>} : vector<16x128xbf16>, vector<512x128xbf16>, vector<16x512xf32> -> vector<16x512xf32>
    %8 = arith.addf %5, %7 : vector<16x512xf32>
    %c0_8 = arith.constant 0 : index
    %c0_9 = arith.constant 0 : index
    %9 = vector.load %arg6[%c0_8, %c0_9] : memref<1x512xf32, #tpu.memory_space<vmem>>, vector<1x512xf32>
    %10 = vector.broadcast %9 : vector<1x512xf32> to vector<16x512xf32>
    %11 = arith.addf %8, %10 : vector<16x512xf32>
    %c0_10 = arith.constant 0 : index
    %c0_11 = arith.constant 0 : index
    %12 = vector.load %arg7[%c0_10, %c0_11] : memref<16x512xf32, #tpu.memory_space<vmem>>, vector<16x512xf32>
    tpu.vector_store %arg7[%c0_10, %c0_11], %11 {strides = array<i32>} : memref<16x512xf32, #tpu.memory_space<vmem>>, vector<16x512xf32>,
    return
  }
  func.func @transform_0(%arg0: i32, %arg1: i32) -> (i32, i32) {
    %c0_i32 = arith.constant 0 : i32
    %c0_i32_0 = arith.constant 0 : i32
    return %arg0, %c0_i32 : i32, i32
  }
  func.func @transform_1(%arg0: i32, %arg1: i32) -> (i32, i32) {
    %c0_i32 = arith.constant 0 : i32
    %c0_i32_0 = arith.constant 0 : i32
    return %arg0, %c0_i32 : i32, i32
  }
  func.func @transform_2(%arg0: i32, %arg1: i32) -> (i32, i32) {
    %c0_i32 = arith.constant 0 : i32
    %c0_i32_0 = arith.constant 0 : i32
    return %arg1, %c0_i32 : i32, i32
  }
  func.func @transform_3(%arg0: i32, %arg1: i32) -> (i32, i32) {
    %c0_i32 = arith.constant 0 : i32
    %c0_i32_0 = arith.constant 0 : i32
    return %arg1, %c0_i32 : i32, i32
  }
  func.func @transform_4(%arg0: i32, %arg1: i32) -> (i32, i32) {
    %c0_i32 = arith.constant 0 : i32
    %c0_i32_0 = arith.constant 0 : i32
    return %c0_i32, %arg1 : i32, i32
  }
  func.func @transform_5(%arg0: i32, %arg1: i32) -> (i32, i32) {
    %c0_i32 = arith.constant 0 : i32
    return %arg0, %arg1 : i32, i32
  }
}

</mosaic_0001>

<llo_original>
// kernel: tpu_custom_call.1
$region0: #{tpu_custom_call.1}
  #allocation0 [shape = 'u32[]', space=smem, size = 0x4, offset = 0x4, fixed_abs, tag = 'smem constant byte address 0x4 - core index']
  #allocation1 [shape = 'u32[144,128]{1,0:T(1,128)}', space=vmem, size = 0x12000, scoped, tag = 'internal scratch']
  %s0 = inlined_call_operand.hbm [shape: f32[16,128], index: 0, kind: input, shape index: {}]
  %s1 = inlined_call_operand.hbm [shape: f32[16,128], index: 1, kind: input, shape index: {}]
  %s2 = inlined_call_operand.hbm [shape: bf16[512,128], index: 2, kind: input, shape index: {}]
  %s3 = inlined_call_operand.hbm [shape: bf16[512,128], index: 3, kind: input, shape index: {}]
  %s4 = inlined_call_operand.vmem [shape: f32[1,512], index: 4, kind: input, shape index: {}]
  %s5 = inlined_call_operand.hbm [shape: f32[16,512], index: 5, kind: output, shape index: {}]
  %s6 = sld [smem:[#allocation0]]
  $region46: #{tpu_custom_call.1} parent=0
    _
  %s8 = ssub.s32 1, %s6
  %s9 = scalar_select 0, %s8, %s6
  $region1: #{tpu_custom_call.1} parent=0
    #allocation2 [shape = 'u8[8192]{0}', space=vmem, size = 0x2000, scoped, tag = 'input window, operand 0, single buffered']
    #allocation3 [shape = 's32[1]{0}', space=sflag, size = 0x4, scoped, tag = 'scoped memory for tpu_custom_call.1']
    #allocation4 [shape = 's32[1]{0}', space=sflag, size = 0x4, scoped, tag = 'scoped memory for tpu_custom_call.1']
    #allocation5 [shape = 'u8[8192]{0}', space=vmem, size = 0x2000, scoped, tag = 'input window, operand 1, single buffered']
    #allocation6 [shape = 's32[1]{0}', space=sflag, size = 0x4, scoped, tag = 'scoped memory for tpu_custom_call.1']
    #allocation7 [shape = 'u8[131072]{0}', space=vmem, size = 0x20000, scoped, tag = 'input window, operand 2, single buffered']
    #allocation8 [shape = 'u8[131072]{0}', space=vmem, size = 0x20000, scoped, tag = 'input window, operand 3, single buffered']
    #allocation9 [shape = 's32[1]{0}', space=sflag, size = 0x4, scoped, tag = 'scoped memory for tpu_custom_call.1']
    #allocation10 [shape = 'u8[32768]{0}', space=vmem, size = 0x8000, scoped, tag = 'output window, operand 0, single buffered']
    %10 = vsyncpa [#allocation3], 0
    %11 = vsyncpa [#allocation6], 0
    %12 = vsyncpa [#allocation9], 0
    %13 = vsyncpa [#allocation4], 0
    // Predicated region
    $region2: #{tpu_custom_call.1} parent=1 // pred_check
      _
    $region3: #{tpu_custom_call.1} parent=1 // pred_check_branch
      %15 = sbr.rel (0) target = $region5
    $region4: #{tpu_custom_call.1} parent=1 // pred_region
      %s17 = ssub.s32 256, 256
      %18 = vsyncadd [#allocation3], %s17
      %s19 = sshll.u32 [#allocation2], 4
      %s20 = int_to_ptr.vmem [resolvable:$true] %s19
      %25 = dma.hbm_to_vmem [thread:$0]  %s0, 256, %s20, [#allocation3], 128, 128, 8
    $region5: #{tpu_custom_call.1} parent=1 // pred_fallthru
      _
    // Predicated region
    $region6: #{tpu_custom_call.1} parent=1 // pred_check
      _
    $region7: #{tpu_custom_call.1} parent=1 // pred_check_branch
      %27 = sbr.rel (0) target = $region9
    $region8: #{tpu_custom_call.1} parent=1 // pred_region
      %s29 = ssub.s32 256, 256
      %30 = vsyncadd [#allocation6], %s29
      %s31 = sshll.u32 [#allocation5], 4
      %s32 = int_to_ptr.vmem [resolvable:$true] %s31
      %37 = dma.hbm_to_vmem [thread:$0]  %s1, 256, %s32, [#allocation6], 128, 128, 8
    $region9: #{tpu_custom_call.1} parent=1 // pred_fallthru
      _
    // Predicated region
    $region10: #{tpu_custom_call.1} parent=1 // pred_check
      _
    $region11: #{tpu_custom_call.1} parent=1 // pred_check_branch
      %39 = sbr.rel (0) target = $region13
    $region12: #{tpu_custom_call.1} parent=1 // pred_region
      %s41 = ssub.s32 4096, 4096
      %42 = vsyncadd [#allocation6], %s41
      %s43 = sshll.u32 [#allocation7], 4
      %s44 = int_to_ptr.vmem [resolvable:$true] %s43
      %49 = dma.hbm_to_vmem [thread:$0]  %s2, 4096, %s44, [#allocation6], 64, 64, 4
    $region13: #{tpu_custom_call.1} parent=1 // pred_fallthru
      _
    // Predicated region
    $region14: #{tpu_custom_call.1} parent=1 // pred_check
      _
    $region15: #{tpu_custom_call.1} parent=1 // pred_check_branch
      %51 = sbr.rel (0) target = $region17
    $region16: #{tpu_custom_call.1} parent=1 // pred_region
      %s53 = ssub.s32 4096, 4096
      %54 = vsyncadd [#allocation9], %s53
      %s55 = sshll.u32 [#allocation8], 4
      %s56 = int_to_ptr.vmem [resolvable:$true] %s55
      %61 = dma.hbm_to_vmem [thread:$0]  %s3, 4096, %s56, [#allocation9], 64, 64, 4
    $region17: #{tpu_custom_call.1} parent=1 // pred_fallthru
      _
    // Predicated region
    $region18: #{tpu_custom_call.1} parent=1 // pred_check
      _
    $region19: #{tpu_custom_call.1} parent=1 // pred_check_branch
      %63 = sbr.rel (0) target = $region21
    $region20: #{tpu_custom_call.1} parent=1 // pred_region
      _
    $region21: #{tpu_custom_call.1} parent=1 // pred_fallthru
      _
    // Predicated region
    $region22: #{tpu_custom_call.1} parent=1 // pred_check
      _
    $region23: #{tpu_custom_call.1} parent=1 // pred_check_branch
      %65 = sbr.rel (0) target = $region25
    $region24: #{tpu_custom_call.1} parent=1 // pred_region
      %66 = dma.done [#allocation3], 256
    $region25: #{tpu_custom_call.1} parent=1 // pred_fallthru
      _
    // Predicated region
    $region26: #{tpu_custom_call.1} parent=1 // pred_check
      _
    $region27: #{tpu_custom_call.1} parent=1 // pred_check_branch
      %68 = sbr.rel (0) target = $region29
    $region28: #{tpu_custom_call.1} parent=1 // pred_region
      %69 = dma.done [#allocation6], 256
    $region29: #{tpu_custom_call.1} parent=1 // pred_fallthru
      _
    // Predicated region
    $region30: #{tpu_custom_call.1} parent=1 // pred_check
      _
    $region31: #{tpu_custom_call.1} parent=1 // pred_check_branch
      %71 = sbr.rel (0) target = $region33
    $region32: #{tpu_custom_call.1} parent=1 // pred_region
      %72 = dma.done [#allocation6], 4096
    $region33: #{tpu_custom_call.1} parent=1 // pred_fallthru
      _
    // Predicated region
    $region34: #{tpu_custom_call.1} parent=1 // pred_check
      _
    $region35: #{tpu_custom_call.1} parent=1 // pred_check_branch
      %74 = sbr.rel (0) target = $region37
    $region36: #{tpu_custom_call.1} parent=1 // pred_region
      %75 = dma.done [#allocation9], 4096
    $region37: #{tpu_custom_call.1} parent=1 // pred_fallthru
      _
    %v77 = vld [vmem:[#allocation2] sm:$0xff]
    %v78 = vld [vmem:[#allocation2 + $0x8] sm:$0xff]
    %v79 = vpack.c.bf16 %v78, %v77
    %v80 = vld [vmem:[#allocation5] sm:$0xff]
    %v81 = vld [vmem:[#allocation5 + $0x8] sm:$0xff]
    %v82 = vpack.c.bf16 %v81, %v80
    %v83 = vld [vmem:[#allocation7] sm:$0xf]
    %v84 = vld [vmem:[#allocation7 + $0x4] sm:$0xf]
    %v85 = vld [vmem:[#allocation7 + $0x8] sm:$0xf]
    %v86 = vld [vmem:[#allocation7 + $0xc] sm:$0xf]
    %v87 = vld [vmem:[#allocation7 + $0x10] sm:$0xf]
    %v88 = vld [vmem:[#allocation7 + $0x14] sm:$0xf]
    %v89 = vld [vmem:[#allocation7 + $0x18] sm:$0xf]
    %v90 = vld [vmem:[#allocation7 + $0x1c] sm:$0xf]
    %v91 = vld [vmem:[#allocation7 + $0x20] sm:$0xf]
    %v92 = vld [vmem:[#allocation7 + $0x24] sm:$0xf]
    %v93 = vld [vmem:[#allocation7 + $0x28] sm:$0xf]
    %v94 = vld [vmem:[#allocation7 + $0x2c] sm:$0xf]
    %v95 = vld [vmem:[#allocation7 + $0x30] sm:$0xf]
    %v96 = vld [vmem:[#allocation7 + $0x34] sm:$0xf]
    %v97 = vld [vmem:[#allocation7 + $0x38] sm:$0xf]
    %v98 = vld [vmem:[#allocation7 + $0x3c] sm:$0xf]
    %v99 = vld [vmem:[#allocation7 + $0x40] sm:$0xf]
    %v100 = vld [vmem:[#allocation7 + $0x44] sm:$0xf]
    %v101 = vld [vmem:[#allocation7 + $0x48] sm:$0xf]
    %v102 = vld [vmem:[#allocation7 + $0x4c] sm:$0xf]
    %v103 = vld [vmem:[#allocation7 + $0x50] sm:$0xf]
    %v104 = vld [vmem:[#allocation7 + $0x54] sm:$0xf]
    %v105 = vld [vmem:[#allocation7 + $0x58] sm:$0xf]
    %v106 = vld [vmem:[#allocation7 + $0x5c] sm:$0xf]
    %v107 = vld [vmem:[#allocation7 + $0x60] sm:$0xf]
    %v108 = vld [vmem:[#allocation7 + $0x64] sm:$0xf]
    %v109 = vld [vmem:[#allocation7 + $0x68] sm:$0xf]
    %v110 = vld [vmem:[#allocation7 + $0x6c] sm:$0xf]
    %v111 = vld [vmem:[#allocation7 + $0x70] sm:$0xf]
    %v112 = vld [vmem:[#allocation7 + $0x74] sm:$0xf]
    %v113 = vld [vmem:[#allocation7 + $0x78] sm:$0xf]
    %v114 = vld [vmem:[#allocation7 + $0x7c] sm:$0xf]
    %v115 = vld [vmem:[#allocation7 + $0x80] sm:$0xf]
    %v116 = vld [vmem:[#allocation7 + $0x84] sm:$0xf]
    %v117 = vld [vmem:[#allocation7 + $0x88] sm:$0xf]
    %v118 = vld [vmem:[#allocation7 + $0x8c] sm:$0xf]
    %v119 = vld [vmem:[#allocation7 + $0x90] sm:$0xf]
    %v120 = vld [vmem:[#allocation7 + $0x94] sm:$0xf]
    %v121 = vld [vmem:[#allocation7 + $0x98] sm:$0xf]
    %v122 = vld [vmem:[#allocation7 + $0x9c] sm:$0xf]
    %v123 = vld [vmem:[#allocation7 + $0xa0] sm:$0xf]
    %v124 = vld [vmem:[#allocation7 + $0xa4] sm:$0xf]
    %v125 = vld [vmem:[#allocation7 + $0xa8] sm:$0xf]
    %v126 = vld [vmem:[#allocation7 + $0xac] sm:$0xf]
    %v127 = vld [vmem:[#allocation7 + $0xb0] sm:$0xf]
    %v128 = vld [vmem:[#allocation7 + $0xb4] sm:$0xf]
    %v129 = vld [vmem:[#allocation7 + $0xb8] sm:$0xf]
    %v130 = vld [vmem:[#allocation7 + $0xbc] sm:$0xf]
    %v131 = vld [vmem:[#allocation7 + $0xc0] sm:$0xf]
    %v132 = vld [vmem:[#allocation7 + $0xc4] sm:$0xf]
    %v133 = vld [vmem:[#allocation7 + $0xc8] sm:$0xf]
    %v134 = vld [vmem:[#allocation7 + $0xcc] sm:$0xf]
    %v135 = vld [vmem:[#allocation7 + $0xd0] sm:$0xf]
    %v136 = vld [vmem:[#allocation7 + $0xd4] sm:$0xf]
    %v137 = vld [vmem:[#allocation7 + $0xd8] sm:$0xf]
    %v138 = vld [vmem:[#allocation7 + $0xdc] sm:$0xf]
    %v139 = vld [vmem:[#allocation7 + $0xe0] sm:$0xf]
    %v140 = vld [vmem:[#allocation7 + $0xe4] sm:$0xf]
    %v141 = vld [vmem:[#allocation7 + $0xe8] sm:$0xf]
    %v142 = vld [vmem:[#allocation7 + $0xec] sm:$0xf]
    %v143 = vld [vmem:[#allocation7 + $0xf0] sm:$0xf]
    %v144 = vld [vmem:[#allocation7 + $0xf4] sm:$0xf]
    %v145 = vld [vmem:[#allocation7 + $0xf8] sm:$0xf]
    %v146 = vld [vmem:[#allocation7 + $0xfc] sm:$0xf]
    %v147 = vld [vmem:[#allocation8] sm:$0xf]
    %v148 = vld [vmem:[#allocation8 + $0x4] sm:$0xf]
    %v149 = vld [vmem:[#allocation8 + $0x8] sm:$0xf]
    %v150 = vld [vmem:[#allocation8 + $0xc] sm:$0xf]
    %v151 = vld [vmem:[#allocation8 + $0x10] sm:$0xf]
    %v152 = vld [vmem:[#allocation8 + $0x14] sm:$0xf]
    %v153 = vld [vmem:[#allocation8 + $0x18] sm:$0xf]
    %v154 = vld [vmem:[#allocation8 + $0x1c] sm:$0xf]
    %v155 = vld [vmem:[#allocation8 + $0x20] sm:$0xf]
    %v156 = vld [vmem:[#allocation8 + $0x24] sm:$0xf]
    %v157 = vld [vmem:[#allocation8 + $0x28] sm:$0xf]
    %v158 = vld [vmem:[#allocation8 + $0x2c] sm:$0xf]
    %v159 = vld [vmem:[#allocation8 + $0x30] sm:$0xf]
    %v160 = vld [vmem:[#allocation8 + $0x34] sm:$0xf]
    %v161 = vld [vmem:[#allocation8 + $0x38] sm:$0xf]
    %v162 = vld [vmem:[#allocation8 + $0x3c] sm:$0xf]
    %v163 = vld [vmem:[#allocation8 + $0x40] sm:$0xf]
    %v164 = vld [vmem:[#allocation8 + $0x44] sm:$0xf]
    %v165 = vld [vmem:[#allocation8 + $0x48] sm:$0xf]
    %v166 = vld [vmem:[#allocation8 + $0x4c] sm:$0xf]
    %v167 = vld [vmem:[#allocation8 + $0x50] sm:$0xf]
    %v168 = vld [vmem:[#allocation8 + $0x54] sm:$0xf]
    %v169 = vld [vmem:[#allocation8 + $0x58] sm:$0xf]
    %v170 = vld [vmem:[#allocation8 + $0x5c] sm:$0xf]
    %v171 = vld [vmem:[#allocation8 + $0x60] sm:$0xf]
    %v172 = vld [vmem:[#allocation8 + $0x64] sm:$0xf]
    %v173 = vld [vmem:[#allocation8 + $0x68] sm:$0xf]
    %v174 = vld [vmem:[#allocation8 + $0x6c] sm:$0xf]
    %v175 = vld [vmem:[#allocation8 + $0x70] sm:$0xf]
    %v176 = vld [vmem:[#allocation8 + $0x74] sm:$0xf]
    %v177 = vld [vmem:[#allocation8 + $0x78] sm:$0xf]
    %v178 = vld [vmem:[#allocation8 + $0x7c] sm:$0xf]
    %v179 = vld [vmem:[#allocation8 + $0x80] sm:$0xf]
    %v180 = vld [vmem:[#allocation8 + $0x84] sm:$0xf]
    %v181 = vld [vmem:[#allocation8 + $0x88] sm:$0xf]
    %v182 = vld [vmem:[#allocation8 + $0x8c] sm:$0xf]
    %v183 = vld [vmem:[#allocation8 + $0x90] sm:$0xf]
    %v184 = vld [vmem:[#allocation8 + $0x94] sm:$0xf]
    %v185 = vld [vmem:[#allocation8 + $0x98] sm:$0xf]
    %v186 = vld [vmem:[#allocation8 + $0x9c] sm:$0xf]
    %v187 = vld [vmem:[#allocation8 + $0xa0] sm:$0xf]
    %v188 = vld [vmem:[#allocation8 + $0xa4] sm:$0xf]
    %v189 = vld [vmem:[#allocation8 + $0xa8] sm:$0xf]
    %v190 = vld [vmem:[#allocation8 + $0xac] sm:$0xf]
    %v191 = vld [vmem:[#allocation8 + $0xb0] sm:$0xf]
    %v192 = vld [vmem:[#allocation8 + $0xb4] sm:$0xf]
    %v193 = vld [vmem:[#allocation8 + $0xb8] sm:$0xf]
    %v194 = vld [vmem:[#allocation8 + $0xbc] sm:$0xf]
    %v195 = vld [vmem:[#allocation8 + $0xc0] sm:$0xf]
    %v196 = vld [vmem:[#allocation8 + $0xc4] sm:$0xf]
    %v197 = vld [vmem:[#allocation8 + $0xc8] sm:$0xf]
    %v198 = vld [vmem:[#allocation8 + $0xcc] sm:$0xf]
    %v199 = vld [vmem:[#allocation8 + $0xd0] sm:$0xf]
    %v200 = vld [vmem:[#allocation8 + $0xd4] sm:$0xf]
    %v201 = vld [vmem:[#allocation8 + $0xd8] sm:$0xf]
    %v202 = vld [vmem:[#allocation8 + $0xdc] sm:$0xf]
    %v203 = vld [vmem:[#allocation8 + $0xe0] sm:$0xf]
    %v204 = vld [vmem:[#allocation8 + $0xe4] sm:$0xf]
    %v205 = vld [vmem:[#allocation8 + $0xe8] sm:$0xf]
    %v206 = vld [vmem:[#allocation8 + $0xec] sm:$0xf]
    %v207 = vld [vmem:[#allocation8 + $0xf0] sm:$0xf]
    %v208 = vld [vmem:[#allocation8 + $0xf4] sm:$0xf]
    %v209 = vld [vmem:[#allocation8 + $0xf8] sm:$0xf]
    %v210 = vld [vmem:[#allocation8 + $0xfc] sm:$0xf]
    %v275 = vunpack.c.l.b16 %v147
    %v276 = vunpack.c.l.b16 %v148
    %v277 = vunpack.c.l.b16 %v149
    %v278 = vunpack.c.l.b16 %v150
    %v279 = vunpack.c.l.b16 %v151
    %v280 = vunpack.c.l.b16 %v152
    %v281 = vunpack.c.l.b16 %v153
    %v282 = vunpack.c.l.b16 %v154
    %v283 = vunpack.c.l.b16 %v155
    %v284 = vunpack.c.l.b16 %v156
    %v285 = vunpack.c.l.b16 %v157
    %v286 = vunpack.c.l.b16 %v158
    %v287 = vunpack.c.l.b16 %v159
    %v288 = vunpack.c.l.b16 %v160
    %v289 = vunpack.c.l.b16 %v161
    %v290 = vunpack.c.l.b16 %v162
    %v291 = vunpack.c.l.b16 %v163
    %v292 = vunpack.c.l.b16 %v164
    %v293 = vunpack.c.l.b16 %v165
    %v294 = vunpack.c.l.b16 %v166
    %v295 = vunpack.c.l.b16 %v167
    %v296 = vunpack.c.l.b16 %v168
    %v297 = vunpack.c.l.b16 %v169
    %v298 = vunpack.c.l.b16 %v170
    %v299 = vunpack.c.l.b16 %v171
    %v300 = vunpack.c.l.b16 %v172
    %v301 = vunpack.c.l.b16 %v173
    %v302 = vunpack.c.l.b16 %v174
    %v303 = vunpack.c.l.b16 %v175
    %v304 = vunpack.c.l.b16 %v176
    %v305 = vunpack.c.l.b16 %v177
    %v306 = vunpack.c.l.b16 %v178
    %v307 = vunpack.c.l.b16 %v179
    %v308 = vunpack.c.l.b16 %v180
    %v309 = vunpack.c.l.b16 %v181
    %v310 = vunpack.c.l.b16 %v182
    %v311 = vunpack.c.l.b16 %v183
    %v312 = vunpack.c.l.b16 %v184
    %v313 = vunpack.c.l.b16 %v185
    %v314 = vunpack.c.l.b16 %v186
    %v315 = vunpack.c.l.b16 %v187
    %v316 = vunpack.c.l.b16 %v188
    %v317 = vunpack.c.l.b16 %v189
    %v318 = vunpack.c.l.b16 %v190
    %v319 = vunpack.c.l.b16 %v191
    %v320 = vunpack.c.l.b16 %v192
    %v321 = vunpack.c.l.b16 %v193
    %v322 = vunpack.c.l.b16 %v194
    %v323 = vunpack.c.l.b16 %v195
    %v324 = vunpack.c.l.b16 %v196
    %v325 = vunpack.c.l.b16 %v197
    %v326 = vunpack.c.l.b16 %v198
    %v327 = vunpack.c.l.b16 %v199
    %v328 = vunpack.c.l.b16 %v200
    %v329 = vunpack.c.l.b16 %v201
    %v330 = vunpack.c.l.b16 %v202
    %v331 = vunpack.c.l.b16 %v203
    %v332 = vunpack.c.l.b16 %v204
    %v333 = vunpack.c.l.b16 %v205
    %v334 = vunpack.c.l.b16 %v206
    %v335 = vunpack.c.l.b16 %v207
    %v336 = vunpack.c.l.b16 %v208
    %v337 = vunpack.c.l.b16 %v209
    %v338 = vunpack.c.l.b16 %v210
    %v339 = vpack.c.b16 %v276, %v275
    %v340 = vpack.c.b16 %v278, %v277
    %v341 = vpack.c.b16 %v280, %v279
    %v342 = vpack.c.b16 %v282, %v281
    %v343 = vpack.c.b16 %v284, %v283
    %v344 = vpack.c.b16 %v286, %v285
    %v345 = vpack.c.b16 %v288, %v287
    %v346 = vpack.c.b16 %v290, %v289
    %v347 = vpack.c.b16 %v292, %v291
    %v348 = vpack.c.b16 %v294, %v293
    %v349 = vpack.c.b16 %v296, %v295
    %v350 = vpack.c.b16 %v298, %v297
    %v351 = vpack.c.b16 %v300, %v299
    %v352 = vpack.c.b16 %v302, %v301
    %v353 = vpack.c.b16 %v304, %v303
    %v354 = vpack.c.b16 %v306, %v305
    %v355 = vpack.c.b16 %v308, %v307
    %v356 = vpack.c.b16 %v310, %v309
    %v357 = vpack.c.b16 %v312, %v311
    %v358 = vpack.c.b16 %v314, %v313
    %v359 = vpack.c.b16 %v316, %v315
    %v360 = vpack.c.b16 %v318, %v317
    %v361 = vpack.c.b16 %v320, %v319
    %v362 = vpack.c.b16 %v322, %v321
    %v363 = vpack.c.b16 %v324, %v323
    %v364 = vpack.c.b16 %v326, %v325
    %v365 = vpack.c.b16 %v328, %v327
    %v366 = vpack.c.b16 %v330, %v329
    %v367 = vpack.c.b16 %v332, %v331
    %v368 = vpack.c.b16 %v334, %v333
    %v369 = vpack.c.b16 %v336, %v335
    %v370 = vpack.c.b16 %v338, %v337
    %403 = vmatprep.subr.bf16.mxu0 0
    %404 = vmatpush1.bf16.xpose.msra.mxu0 %v339
    %405 = vmatprep.subr.bf16.mxu0 0
    %406 = vmatpush1.bf16.xpose.msra.mxu0 %v340
    %407 = vmatprep.subr.bf16.mxu0 0
    %408 = vmatpush1.bf16.xpose.msra.mxu0 %v341
    %409 = vmatprep.subr.bf16.mxu0 0
    %410 = vmatpush1.bf16.xpose.msra.mxu0 %v342
    %411 = vmatprep.subr.bf16.mxu0 0
    %412 = vmatpush1.bf16.xpose.msra.mxu0 %v343
    %413 = vmatprep.subr.bf16.mxu0 0
    %414 = vmatpush1.bf16.xpose.msra.mxu0 %v344
    %415 = vmatprep.subr.bf16.mxu0 0
    %416 = vmatpush1.bf16.xpose.msra.mxu0 %v345
    %417 = vmatprep.subr.bf16.mxu0 0
    %418 = vmatpush1.bf16.xpose.msra.mxu0 %v346
    %419 = vmatprep.subr.bf16.mxu0 0
    %420 = vmatpush1.bf16.xpose.msra.mxu0 %v347
    %421 = vmatprep.subr.bf16.mxu0 0
    %422 = vmatpush1.bf16.xpose.msra.mxu0 %v348
    %423 = vmatprep.subr.bf16.mxu0 0
    %424 = vmatpush1.bf16.xpose.msra.mxu0 %v349
    %425 = vmatprep.subr.bf16.mxu0 0
    %426 = vmatpush1.bf16.xpose.msra.mxu0 %v350
    %427 = vmatprep.subr.bf16.mxu0 0
    %428 = vmatpush1.bf16.xpose.msra.mxu0 %v351
    %429 = vmatprep.subr.bf16.mxu0 0
    %430 = vmatpush1.bf16.xpose.msra.mxu0 %v352
    %431 = vmatprep.subr.bf16.mxu0 0
    %432 = vmatpush1.bf16.xpose.msra.mxu0 %v353
    %433 = vmatprep.subr.bf16.mxu0 0
    %434 = vmatpush1.bf16.xpose.msra.mxu0 %v354
    %435 = vmatprep.mubr.bf16.mxu0 0
    %436 = vmatmul.mubr.bf16.gmra.mrb[0].mxu0 %v82
    %v437 = vpop.f32.mrb[0].mxu0
    %v438 = vadd.f32 0.0, %v437
    %v439 = vpop.f32.mrb[0].mxu0
    %v440 = vadd.f32 0.0, %v439
    %v441 = vpop.f32.mrb[0].mxu0
    %v442 = vadd.f32 0.0, %v441
    %v443 = vpop.f32.mrb[0].mxu0
    %v444 = vadd.f32 0.0, %v443
    %445 = vdwg.mxu0
    %446 = vmatprep.subr.bf16.mxu0 0
    %447 = vmatpush1.bf16.xpose.msra.mxu0 %v355
    %448 = vmatprep.subr.bf16.mxu0 0
    %449 = vmatpush1.bf16.xpose.msra.mxu0 %v356
    %450 = vmatprep.subr.bf16.mxu0 0
    %451 = vmatpush1.bf16.xpose.msra.mxu0 %v357
    %452 = vmatprep.subr.bf16.mxu0 0
    %453 = vmatpush1.bf16.xpose.msra.mxu0 %v358
    %454 = vmatprep.subr.bf16.mxu0 0
    %455 = vmatpush1.bf16.xpose.msra.mxu0 %v359
    %456 = vmatprep.subr.bf16.mxu0 0
    %457 = vmatpush1.bf16.xpose.msra.mxu0 %v360
    %458 = vmatprep.subr.bf16.mxu0 0
    %459 = vmatpush1.bf16.xpose.msra.mxu0 %v361
    %460 = vmatprep.subr.bf16.mxu0 0
    %461 = vmatpush1.bf16.xpose.msra.mxu0 %v362
    %462 = vmatprep.subr.bf16.mxu0 0
    %463 = vmatpush1.bf16.xpose.msra.mxu0 %v363
    %464 = vmatprep.subr.bf16.mxu0 0
    %465 = vmatpush1.bf16.xpose.msra.mxu0 %v364
    %466 = vmatprep.subr.bf16.mxu0 0
    %467 = vmatpush1.bf16.xpose.msra.mxu0 %v365
    %468 = vmatprep.subr.bf16.mxu0 0
    %469 = vmatpush1.bf16.xpose.msra.mxu0 %v366
    %470 = vmatprep.subr.bf16.mxu0 0
    %471 = vmatpush1.bf16.xpose.msra.mxu0 %v367
    %472 = vmatprep.subr.bf16.mxu0 0
    %473 = vmatpush1.bf16.xpose.msra.mxu0 %v368
    %474 = vmatprep.subr.bf16.mxu0 0
    %475 = vmatpush1.bf16.xpose.msra.mxu0 %v369
    %476 = vmatprep.subr.bf16.mxu0 0
    %477 = vmatpush1.bf16.xpose.msra.mxu0 %v370
    %478 = vmatprep.mubr.bf16.mxu0 0
    %479 = vmatmul.mubr.bf16.gmra.mrb[0].mxu0 %v82
    %v480 = vpop.f32.mrb[0].mxu0
    %v481 = vadd.f32 0.0, %v480
    %v482 = vpop.f32.mrb[0].mxu0
    %v483 = vadd.f32 0.0, %v482
    %v484 = vpop.f32.mrb[0].mxu0
    %v485 = vadd.f32 0.0, %v484
    %v486 = vpop.f32.mrb[0].mxu0
    %v487 = vadd.f32 0.0, %v486
    %488 = vdwg.mxu0
    %v553 = vunpack.c.l.b16 %v83
    %v554 = vunpack.c.l.b16 %v84
    %v555 = vunpack.c.l.b16 %v85
    %v556 = vunpack.c.l.b16 %v86
    %v557 = vunpack.c.l.b16 %v87
    %v558 = vunpack.c.l.b16 %v88
    %v559 = vunpack.c.l.b16 %v89
    %v560 = vunpack.c.l.b16 %v90
    %v561 = vunpack.c.l.b16 %v91
    %v562 = vunpack.c.l.b16 %v92
    %v563 = vunpack.c.l.b16 %v93
    %v564 = vunpack.c.l.b16 %v94
    %v565 = vunpack.c.l.b16 %v95
    %v566 = vunpack.c.l.b16 %v96
    %v567 = vunpack.c.l.b16 %v97
    %v568 = vunpack.c.l.b16 %v98
    %v569 = vunpack.c.l.b16 %v99
    %v570 = vunpack.c.l.b16 %v100
    %v571 = vunpack.c.l.b16 %v101
    %v572 = vunpack.c.l.b16 %v102
    %v573 = vunpack.c.l.b16 %v103
    %v574 = vunpack.c.l.b16 %v104
    %v575 = vunpack.c.l.b16 %v105
    %v576 = vunpack.c.l.b16 %v106
    %v577 = vunpack.c.l.b16 %v107
    %v578 = vunpack.c.l.b16 %v108
    %v579 = vunpack.c.l.b16 %v109
    %v580 = vunpack.c.l.b16 %v110
    %v581 = vunpack.c.l.b16 %v111
    %v582 = vunpack.c.l.b16 %v112
    %v583 = vunpack.c.l.b16 %v113
    %v584 = vunpack.c.l.b16 %v114
    %v585 = vunpack.c.l.b16 %v115
    %v586 = vunpack.c.l.b16 %v116
    %v587 = vunpack.c.l.b16 %v117
    %v588 = vunpack.c.l.b16 %v118
    %v589 = vunpack.c.l.b16 %v119
    %v590 = vunpack.c.l.b16 %v120
    %v591 = vunpack.c.l.b16 %v121
    %v592 = vunpack.c.l.b16 %v122
    %v593 = vunpack.c.l.b16 %v123
    %v594 = vunpack.c.l.b16 %v124
    %v595 = vunpack.c.l.b16 %v125
    %v596 = vunpack.c.l.b16 %v126
    %v597 = vunpack.c.l.b16 %v127
    %v598 = vunpack.c.l.b16 %v128
    %v599 = vunpack.c.l.b16 %v129
    %v600 = vunpack.c.l.b16 %v130
    %v601 = vunpack.c.l.b16 %v131
    %v602 = vunpack.c.l.b16 %v132
    %v603 = vunpack.c.l.b16 %v133
    %v604 = vunpack.c.l.b16 %v134
    %v605 = vunpack.c.l.b16 %v135
    %v606 = vunpack.c.l.b16 %v136
    %v607 = vunpack.c.l.b16 %v137
    %v608 = vunpack.c.l.b16 %v138
    %v609 = vunpack.c.l.b16 %v139
    %v610 = vunpack.c.l.b16 %v140
    %v611 = vunpack.c.l.b16 %v141
    %v612 = vunpack.c.l.b16 %v142
    %v613 = vunpack.c.l.b16 %v143
    %v614 = vunpack.c.l.b16 %v144
    %v615 = vunpack.c.l.b16 %v145
    %v616 = vunpack.c.l.b16 %v146
    %v617 = vpack.c.b16 %v554, %v553
    %v618 = vpack.c.b16 %v556, %v555
    %v619 = vpack.c.b16 %v558, %v557
    %v620 = vpack.c.b16 %v560, %v559
    %v621 = vpack.c.b16 %v562, %v561
    %v622 = vpack.c.b16 %v564, %v563
    %v623 = vpack.c.b16 %v566, %v565
    %v624 = vpack.c.b16 %v568, %v567
    %v625 = vpack.c.b16 %v570, %v569
    %v626 = vpack.c.b16 %v572, %v571
    %v627 = vpack.c.b16 %v574, %v573
    %v628 = vpack.c.b16 %v576, %v575
    %v629 = vpack.c.b16 %v578, %v577
    %v630 = vpack.c.b16 %v580, %v579
    %v631 = vpack.c.b16 %v582, %v581
    %v632 = vpack.c.b16 %v584, %v583
    %v633 = vpack.c.b16 %v586, %v585
    %v634 = vpack.c.b16 %v588, %v587
    %v635 = vpack.c.b16 %v590, %v589
    %v636 = vpack.c.b16 %v592, %v591
    %v637 = vpack.c.b16 %v594, %v593
    %v638 = vpack.c.b16 %v596, %v595
    %v639 = vpack.c.b16 %v598, %v597
    %v640 = vpack.c.b16 %v600, %v599
    %v641 = vpack.c.b16 %v602, %v601
    %v642 = vpack.c.b16 %v604, %v603
    %v643 = vpack.c.b16 %v606, %v605
    %v644 = vpack.c.b16 %v608, %v607
    %v645 = vpack.c.b16 %v610, %v609
    %v646 = vpack.c.b16 %v612, %v611
    %v647 = vpack.c.b16 %v614, %v613
    %v648 = vpack.c.b16 %v616, %v615
    %681 = vmatprep.subr.bf16.mxu0 0
    %682 = vmatpush1.bf16.xpose.msra.mxu0 %v617
    %683 = vmatprep.subr.bf16.mxu0 0
    %684 = vmatpush1.bf16.xpose.msra.mxu0 %v618
    %685 = vmatprep.subr.bf16.mxu0 0
    %686 = vmatpush1.bf16.xpose.msra.mxu0 %v619
    %687 = vmatprep.subr.bf16.mxu0 0
    %688 = vmatpush1.bf16.xpose.msra.mxu0 %v620
    %689 = vmatprep.subr.bf16.mxu0 0
    %690 = vmatpush1.bf16.xpose.msra.mxu0 %v621
    %691 = vmatprep.subr.bf16.mxu0 0
    %692 = vmatpush1.bf16.xpose.msra.mxu0 %v622
    %693 = vmatprep.subr.bf16.mxu0 0
    %694 = vmatpush1.bf16.xpose.msra.mxu0 %v623
    %695 = vmatprep.subr.bf16.mxu0 0
    %696 = vmatpush1.bf16.xpose.msra.mxu0 %v624
    %697 = vmatprep.subr.bf16.mxu0 0
    %698 = vmatpush1.bf16.xpose.msra.mxu0 %v625
    %699 = vmatprep.subr.bf16.mxu0 0
    %700 = vmatpush1.bf16.xpose.msra.mxu0 %v626
    %701 = vmatprep.subr.bf16.mxu0 0
    %702 = vmatpush1.bf16.xpose.msra.mxu0 %v627
    %703 = vmatprep.subr.bf16.mxu0 0
    %704 = vmatpush1.bf16.xpose.msra.mxu0 %v628
    %705 = vmatprep.subr.bf16.mxu0 0
    %706 = vmatpush1.bf16.xpose.msra.mxu0 %v629
    %707 = vmatprep.subr.bf16.mxu0 0
    %708 = vmatpush1.bf16.xpose.msra.mxu0 %v630
    %709 = vmatprep.subr.bf16.mxu0 0
    %710 = vmatpush1.bf16.xpose.msra.mxu0 %v631
    %711 = vmatprep.subr.bf16.mxu0 0
    %712 = vmatpush1.bf16.xpose.msra.mxu0 %v632
    %713 = vmatprep.mubr.bf16.mxu0 0
    %714 = vmatmul.mubr.bf16.gmra.mrb[0].mxu0 %v79
    %v715 = vpop.f32.mrb[0].mxu0
    %v716 = vadd.f32 %v438, %v715
    %v717 = vpop.f32.mrb[0].mxu0
    %v718 = vadd.f32 %v440, %v717
    %v719 = vpop.f32.mrb[0].mxu0
    %v720 = vadd.f32 %v442, %v719
    %v721 = vpop.f32.mrb[0].mxu0
    %v722 = vadd.f32 %v444, %v721
    %723 = vdwg.mxu0
    %724 = vmatprep.subr.bf16.mxu0 0
    %725 = vmatpush1.bf16.xpose.msra.mxu0 %v633
    %726 = vmatprep.subr.bf16.mxu0 0
    %727 = vmatpush1.bf16.xpose.msra.mxu0 %v634
    %728 = vmatprep.subr.bf16.mxu0 0
    %729 = vmatpush1.bf16.xpose.msra.mxu0 %v635
    %730 = vmatprep.subr.bf16.mxu0 0
    %731 = vmatpush1.bf16.xpose.msra.mxu0 %v636
    %732 = vmatprep.subr.bf16.mxu0 0
    %733 = vmatpush1.bf16.xpose.msra.mxu0 %v637
    %734 = vmatprep.subr.bf16.mxu0 0
    %735 = vmatpush1.bf16.xpose.msra.mxu0 %v638
    %736 = vmatprep.subr.bf16.mxu0 0
    %737 = vmatpush1.bf16.xpose.msra.mxu0 %v639
    %738 = vmatprep.subr.bf16.mxu0 0
    %739 = vmatpush1.bf16.xpose.msra.mxu0 %v640
    %740 = vmatprep.subr.bf16.mxu0 0
    %741 = vmatpush1.bf16.xpose.msra.mxu0 %v641
    %742 = vmatprep.subr.bf16.mxu0 0
    %743 = vmatpush1.bf16.xpose.msra.mxu0 %v642
    %744 = vmatprep.subr.bf16.mxu0 0
    %745 = vmatpush1.bf16.xpose.msra.mxu0 %v643
    %746 = vmatprep.subr.bf16.mxu0 0
    %747 = vmatpush1.bf16.xpose.msra.mxu0 %v644
    %748 = vmatprep.subr.bf16.mxu0 0
    %749 = vmatpush1.bf16.xpose.msra.mxu0 %v645
    %750 = vmatprep.subr.bf16.mxu0 0
    %751 = vmatpush1.bf16.xpose.msra.mxu0 %v646
    %752 = vmatprep.subr.bf16.mxu0 0
    %753 = vmatpush1.bf16.xpose.msra.mxu0 %v647
    %754 = vmatprep.subr.bf16.mxu0 0
    %755 = vmatpush1.bf16.xpose.msra.mxu0 %v648
    %756 = vmatprep.mubr.bf16.mxu0 0
    %757 = vmatmul.mubr.bf16.gmra.mrb[0].mxu0 %v79
    %v758 = vpop.f32.mrb[0].mxu0
    %v759 = vadd.f32 %v481, %v758
    %v760 = vpop.f32.mrb[0].mxu0
    %v761 = vadd.f32 %v483, %v760
    %v762 = vpop.f32.mrb[0].mxu0
    %v763 = vadd.f32 %v485, %v762
    %v764 = vpop.f32.mrb[0].mxu0
    %v765 = vadd.f32 %v487, %v764
    %766 = vdwg.mxu0
    %v767 = vld [vmem:[%s4] sm:$0xf]
    %v769 = vlaneseq
    %v770 = vshrl.u32 %v769, 7
    %v771 = vsub.s32 0, %v770
    %v772 = vrot.slane %v767, %v771
    %v773 = vlaneseq
    %v774 = vshrl.u32 %v773, 7
    %v775 = vsub.s32 1, %v774
    %v776 = vrot.slane %v767, %v775
    %v777 = vlaneseq
    %v778 = vshrl.u32 %v777, 7
    %v779 = vsub.s32 2, %v778
    %v780 = vrot.slane %v767, %v779
    %v781 = vlaneseq
    %v782 = vshrl.u32 %v781, 7
    %v783 = vsub.s32 3, %v782
    %v784 = vrot.slane %v767, %v783
    %v789 = vadd.f32 %v716, %v772
    %v790 = vadd.f32 %v718, %v776
    %v791 = vadd.f32 %v759, %v780
    %v792 = vadd.f32 %v761, %v784
    %v793 = vadd.f32 %v720, %v772
    %v794 = vadd.f32 %v722, %v776
    %v795 = vadd.f32 %v763, %v780
    %v796 = vadd.f32 %v765, %v784
    %797 = vst [vmem:[#allocation10] sm:$0xff] %v789
    %798 = vst [vmem:[#allocation10 + $0x8] sm:$0xff] %v790
    %799 = vst [vmem:[#allocation10 + $0x10] sm:$0xff] %v791
    %800 = vst [vmem:[#allocation10 + $0x18] sm:$0xff] %v792
    %801 = vst [vmem:[#allocation10 + $0x20] sm:$0xff] %v793
    %802 = vst [vmem:[#allocation10 + $0x28] sm:$0xff] %v794
    %803 = vst [vmem:[#allocation10 + $0x30] sm:$0xff] %v795
    %804 = vst [vmem:[#allocation10 + $0x38] sm:$0xff] %v796
    // Predicated region
    $region38: #{tpu_custom_call.1} parent=1 // pred_check
      _
    $region39: #{tpu_custom_call.1} parent=1 // pred_check_branch
      %806 = sbr.rel (0) target = $region41
    $region40: #{tpu_custom_call.1} parent=1 // pred_region
      %s808 = ssub.s32 1024, 1024
      %809 = vsyncadd [#allocation4], %s808
      %s810 = sshll.u32 [#allocation10], 4
      %s811 = int_to_ptr.vmem [resolvable:$true] %s810
      %816 = dma.vmem_to_hbm [thread:$0]  %s811, 1024, %s5, [#allocation4], 512, 512, 32
    $region41: #{tpu_custom_call.1} parent=1 // pred_fallthru
      _
    // Predicated region
    $region42: #{tpu_custom_call.1} parent=1 // pred_check
      _
    $region43: #{tpu_custom_call.1} parent=1 // pred_check_branch
      %818 = sbr.rel (0) target = $region45
    $region44: #{tpu_custom_call.1} parent=1 // pred_region
      %819 = dma.done [#allocation4], 1024
    $region45: #{tpu_custom_call.1} parent=1 // pred_fallthru
      _
    %820 = vsyncpa [#allocation3], 1
    %821 = vsyncpa [#allocation6], 1
    %822 = vsyncpa [#allocation9], 1
    %823 = vsyncpa [#allocation4], 1

</llo_original>
